<compile_context>
chip_gen: v6e
topology: v6e:2x2x1
jax: 0.10.0
libtpu: 0.0.40
codegen_flags: <defaults>
</compile_context>

<pallas_src>
import math

import jax
import jax.numpy as jnp
from jax import lax
from jax.experimental import pallas as pl
from jax.experimental.pallas import tpu as pltpu

_TILE_VMEM_BUDGET = 24 * 1024 * 1024   # soft budget for double-buffered tiles (f32)
_VMEM_LIMIT_BYTES = 32 * 1024 * 1024   # safe on v5e/v6e (128 MiB) and v7x (64 MiB phys)
_ELEMENTWISE_D_MIN = 128               # above this, reuse materialized dnorm2 for K
_MAX_MEDIAN_ELEMENTS = 1 << 20         # exact median up to this many entries


def _round_up(x, m):
    return ((x + m - 1) // m) * m


def _fused_vmem_bytes(tm, tn, d):
    # X(tm,d) + Y(tn,d) + xx(tm,1) + yy(1,tn) + out(tm,tn), double-buffered, f32.
    return 4 * 2 * (tm * d + tn * d + tm + tn + tm * tn)


def _pick_tiles(n, m, d):
    """D-aware, VMEM-budget-aware tile choice.

    tm is a multiple of 8 (sublane), tn a multiple of 128 (lane-dense output
    stores).  Picks the largest output tile whose double-buffered pipeline
    fits the VMEM budget (bigger tiles also cut input re-read traffic, which
    matters most at large D).
    """
    tm_cap = min(512, _round_up(n, 8))
    tn_cap = min(512, _round_up(m, 128))
    tm_cands = sorted({c for c in (8, 16, 32, 64, 128, 256, 384, 512, tm_cap)
                       if c <= tm_cap})
    tn_cands = sorted({c for c in (128, 256, 384, 512, tn_cap) if c <= tn_cap})
    best = (tm_cands[0], tn_cands[0])
    for tn in tn_cands:
        for tm in tm_cands:
            if _fused_vmem_bytes(tm, tn, d) > _TILE_VMEM_BUDGET:
                continue
            if tm * tn > best[0] * best[1]:
                best = (tm, tn)
    return best


# ----------------------------------------------------------------------------
# Kernels
# ----------------------------------------------------------------------------
def _laplace_fused_kernel(gamma_ref, x_ref, y_ref, xx_ref, yy_ref, out_ref):
    """K = exp(-gamma * sqrt(max(||x||^2 + ||y||^2 - 2 x.y, 0)))."""
    gamma = gamma_ref[0]                                     # scalar from SMEM
    xy = lax.dot_general(                                    # (tm, tn) on MXU
        x_ref[...], y_ref[...],
        dimension_numbers=(((1,), (1,)), ((), ())),          # contract last dims
        preferred_element_type=jnp.float32,
    )
    d2 = xx_ref[...] + yy_ref[...] - 2.0 * xy                # VPU broadcasts
    dist = jnp.sqrt(jnp.maximum(d2, 0.0))                    # cdist p=2
    out_ref[...] = jnp.exp(-gamma * dist)                    # EUP


def _sqdist_kernel(x_ref, y_ref, xx_ref, yy_ref, out_ref):
    """dnorm2 tile (no clamp, matching the reference's median input)."""
    xy = lax.dot_general(
        x_ref[...], y_ref[...],
        dimension_numbers=(((1,), (1,)), ((), ())),
        preferred_element_type=jnp.float32,
    )
    out_ref[...] = xx_ref[...] + yy_ref[...] - 2.0 * xy


def _laplace_from_d2_kernel(gamma_ref, d2_ref, out_ref):
    """Element-wise: K = exp(-gamma * sqrt(max(d2, 0)))."""
    gamma = gamma_ref[0]
    dist = jnp.sqrt(jnp.maximum(d2_ref[...], 0.0))
    out_ref[...] = jnp.exp(-gamma * dist)


# ----------------------------------------------------------------------------
# pallas_call wrappers
# ----------------------------------------------------------------------------
def _pairwise_specs(n, m, d, tm, tn):
    # Grid ordering note: with tm == tn (usual case) X-resident-vs-Y-resident
    # input traffic is symmetric, so the default (rows outer, cols inner)
    # ordering is kept.
    grid = (pl.cdiv(n, tm), pl.cdiv(m, tn))
    in_specs = [
        pl.BlockSpec((tm, d), lambda i, j: (i, 0)),    # X tile (full depth)
        pl.BlockSpec((tn, d), lambda i, j: (j, 0)),    # Y tile (full depth)
        pl.BlockSpec((tm, 1), lambda i, j: (i, 0)),    # ||x||^2 column
        pl.BlockSpec((1, tn), lambda i, j: (0, j)),    # ||y||^2 row
    ]
    out_spec = pl.BlockSpec((tm, tn), lambda i, j: (i, j))
    params = pltpu.CompilerParams(
        dimension_semantics=("parallel", "parallel"),  # megacore sharding (v7x)
        vmem_limit_bytes=_VMEM_LIMIT_BYTES,
    )
    return grid, in_specs, out_spec, params


def _pairwise_sqdist(x, y, xx, yy, tm, tn):
    n, d = x.shape
    m, _ = y.shape
    grid, in_specs, out_spec, params = _pairwise_specs(n, m, d, tm, tn)
    cost = pl.CostEstimate(
        flops=2 * n * m * d + 3 * n * m,
        transcendentals=0,
        bytes_accessed=4 * (n * d + m * d + n * m + n + m),
    )
    return pl.pallas_call(
        _sqdist_kernel,
        out_shape=jax.ShapeDtypeStruct((n, m), jnp.float32),
        grid=grid,
        in_specs=in_specs,
        out_specs=out_spec,
        compiler_params=params,
        cost_estimate=cost,
    )(x, y, xx, yy)


def _laplace_fused(gamma, x, y, xx, yy, tm, tn):
    n, d = x.shape
    m, _ = y.shape
    grid, in_specs, out_spec, params = _pairwise_specs(n, m, d, tm, tn)
    cost = pl.CostEstimate(
        flops=2 * n * m * d + 5 * n * m,
        transcendentals=2 * n * m,
        bytes_accessed=4 * (n * d + m * d + n * m + n + m),
    )
    gamma_arr = jnp.reshape(jnp.asarray(gamma, dtype=jnp.float32), (1,))
    return pl.pallas_call(
        _laplace_fused_kernel,
        out_shape=jax.ShapeDtypeStruct((n, m), jnp.float32),
        grid=grid,
        in_specs=[pl.BlockSpec(memory_space=pltpu.MemorySpace.SMEM)] + in_specs,
        out_specs=out_spec,
        compiler_params=params,
        cost_estimate=cost,
    )(gamma_arr, x, y, xx, yy)


def _laplace_from_d2(gamma, d2):
    n, m = d2.shape
    tm = min(512, _round_up(n, 8))
    tn = min(512, _round_up(m, 128))
    grid = (pl.cdiv(n, tm), pl.cdiv(m, tn))
    cost = pl.CostEstimate(
        flops=3 * n * m,
        transcendentals=2 * n * m,
        bytes_accessed=8 * n * m,
    )
    gamma_arr = jnp.reshape(jnp.asarray(gamma, dtype=jnp.float32), (1,))
    return pl.pallas_call(
        _laplace_from_d2_kernel,
        out_shape=jax.ShapeDtypeStruct((n, m), jnp.float32),
        grid=grid,
        in_specs=[pl.BlockSpec(memory_space=pltpu.MemorySpace.SMEM),
                  pl.BlockSpec((tm, tn), lambda i, j: (i, j))],
        out_specs=pl.BlockSpec((tm, tn), lambda i, j: (i, j)),
        compiler_params=pltpu.CompilerParams(
            dimension_semantics=("parallel", "parallel"),
            vmem_limit_bytes=_VMEM_LIMIT_BYTES),
        cost_estimate=cost,
    )(gamma_arr, d2)


# ----------------------------------------------------------------------------
# Median (plain JAX; matches the PyTorch helper, which averages the two middle
# elements for even length)
# ----------------------------------------------------------------------------
def _exact_median_1d(flat):
    flat = jnp.sort(flat)
    length = flat.shape[0]
    if length % 2 == 0:
        szh = length // 2
        return (flat[szh - 1] + flat[szh]) * 0.5
    return flat[(length - 1) // 2]


def _median(t):
    flat = t.reshape(-1)
    size = flat.shape[0]
    if size > _MAX_MEDIAN_ELEMENTS:
        # TODO(synk): approximate quantile via deterministic strided subsample;
        # avoids the O(NM log NM) full sort dominating wall-clock at large N*M.
        stride = -(-size // _MAX_MEDIAN_ELEMENTS)
        flat = flat[::stride]
    return _exact_median_1d(flat)


# ----------------------------------------------------------------------------
# Module wrapper (forward pass of Laplace)
# ----------------------------------------------------------------------------
def laplace_forward(X, Y, s=None):
    """X: (N, D), Y: (M, D) float32 -> K_XY: (N, M) float32."""
    X = jnp.asarray(X, jnp.float32)
    Y = jnp.asarray(Y, jnp.float32)
    n, d = X.shape
    m, _ = Y.shape

    tm, tn = _pick_tiles(n, m, d)

    # Row norms precomputed once (tiny) -> not recomputed per (i, j) tile.
    xx = jnp.sum(X * X, axis=1, keepdims=True)        # (n, 1)
    yy = jnp.sum(Y * Y, axis=1, keepdims=True).T      # (1, m)

    if s is None:
        # dnorm2 must be materialized for the median anyway.
        d2 = _pairwise_sqdist(X, Y, xx, yy, tm, tn)
        s_val = _median(d2) / jnp.float32(math.log(n + 1))
        gamma = 1.0 / s_val
        if d >= _ELEMENTWISE_D_MIN:
            # Re-reading dnorm2 (4 B/output) beats re-running the matmul for
            # large D (D-dependent X/Y re-reads + a second MXU pass).
            return _laplace_from_d2(gamma, d2)
        return _laplace_fused(gamma, X, Y, xx, yy, tm, tn)

    gamma = 1.0 / jnp.asarray(s, dtype=jnp.float32)
    # Fused distance + exp: the (N, M) distance matrix never touches HBM.
    return _laplace_fused(gamma, X, Y, xx, yy, tm, tn)


# ----------------------------------------------------------------------------
# Self-test
# ----------------------------------------------------------------------------
def _reference(X, Y, s=None):
    d2 = (jnp.sum(X * X, axis=1, keepdims=True)
          + jnp.sum(Y * Y, axis=1, keepdims=True).T
          - 2.0 * (X @ Y.T))
    if s is None:
        s = _exact_median_1d(d2.reshape(-1)) / jnp.float32(math.log(X.shape[0] + 1))
    gamma = 1.0 / jnp.asarray(s, jnp.float32)
    return jnp.exp(-gamma * jnp.sqrt(jnp.maximum(d2, 0.0)))


if __name__ == "__main__":
    key = jax.random.PRNGKey(0)
    k1, k2, k3, k4 = jax.random.split(key, 4)

    # Case 1: small shapes, median-bandwidth path (s is None) + fixed-s path.
    N, M, D = 16, 8, 32
    X = jax.random.normal(k1, (N, D), dtype=jnp.float32)
    Y = jax.random.normal(k2, (M, D), dtype=jnp.float32)

    K = jax.block_until_ready(laplace_forward(X, Y))
    ref = _reference(X, Y)
    assert K.shape == (N, M)
    assert jnp.allclose(K, ref, atol=1e-4, rtol=1e-4), float(jnp.max(jnp.abs(K - ref)))

    K_fixed = jax.block_until_ready(laplace_forward(X, Y, s=2.0))
    ref_fixed = _reference(X, Y, s=2.0)
    assert K_fixed.shape == (N, M)
    assert jnp.allclose(K_fixed, ref_fixed, atol=1e-4, rtol=1e-4)

    # Case 2: ragged (non tile-multiple) shapes + large-D element-wise K path.
    N2, M2, D2 = 40, 24, 160
    X2 = jax.random.normal(k3, (N2, D2), dtype=jnp.float32)
    Y2 = jax.random.normal(k4, (M2, D2), dtype=jnp.float32)

    K2 = jax.block_until_ready(laplace_forward(X2, Y2))
    ref2 = _reference(X2, Y2)
    assert K2.shape == (N2, M2)
    assert jnp.allclose(K2, ref2, atol=1e-4, rtol=1e-4), float(jnp.max(jnp.abs(K2 - ref2)))

    print("KERNEL_OK")
</pallas_src>

<mosaic_0001>
module attributes {stable_mosaic.version = 11 : i64} {
  func.func @_sqdist_kernel(%arg0: i32, %arg1: i32, %arg2: memref<16x32xf32, #tpu.memory_space<vmem>>, %arg3: memref<128x32xf32, #tpu.memory_space<vmem>>, %arg4: memref<16x1xf32, #tpu.memory_space<vmem>>, %arg5: memref<1x128xf32, #tpu.memory_space<vmem>>, %arg6: memref<16x128xf32, #tpu.memory_space<vmem>>) attributes {dimension_semantics = [#tpu.dimension_semantics<parallel>, #tpu.dimension_semantics<parallel>], iteration_bounds = array<i64: 1, 1>, scalar_prefetch = 0 : i64, scratch_operands = 0 : i64, tpu.core_type = #tpu.core_type<tc>, window_params = [{transform_indices = @transform_0, window_bounds = array<i64: 16, 32>}, {transform_indices = @transform_1, window_bounds = array<i64: 128, 32>}, {transform_indices = @transform_2, window_bounds = array<i64: 16, 1>}, {transform_indices = @transform_3, window_bounds = array<i64: 1, 128>}, {transform_indices = @transform_4, window_bounds = array<i64: 16, 128>}]} {
    %c0 = arith.constant 0 : index
    %c0_0 = arith.constant 0 : index
    %0 = vector.load %arg2[%c0, %c0_0] : memref<16x32xf32, #tpu.memory_space<vmem>>, vector<16x32xf32>
    %c0_1 = arith.constant 0 : index
    %c0_2 = arith.constant 0 : index
    %1 = vector.load %arg3[%c0_1, %c0_2] : memref<128x32xf32, #tpu.memory_space<vmem>>, vector<128x32xf32>
    %cst = arith.constant dense<0.000000e+00> : vector<16x128xf32>
    %2 = tpu.matmul %0, %1, %cst {dimension_numbers = #tpu.dot_dimension_numbers<[1], [1], [0], [0], [0, 0, 1, 0], [], []>} : vector<16x32xf32>, vector<128x32xf32>, vector<16x128xf32> -> vector<16x128xf32>
    %c0_3 = arith.constant 0 : index
    %c0_4 = arith.constant 0 : index
    %3 = vector.load %arg4[%c0_3, %c0_4] : memref<16x1xf32, #tpu.memory_space<vmem>>, vector<16x1xf32>
    %c0_5 = arith.constant 0 : index
    %c0_6 = arith.constant 0 : index
    %4 = vector.load %arg5[%c0_5, %c0_6] : memref<1x128xf32, #tpu.memory_space<vmem>>, vector<1x128xf32>
    %5 = vector.broadcast %3 : vector<16x1xf32> to vector<16x128xf32>
    %6 = vector.broadcast %4 : vector<1x128xf32> to vector<16x128xf32>
    %7 = arith.addf %5, %6 : vector<16x128xf32>
    %cst_7 = arith.constant 2.000000e+00 : f32
    %8 = vector.broadcast %cst_7 : f32 to vector<16x128xf32>
    %9 = arith.mulf %8, %2 : vector<16x128xf32>
    %10 = arith.subf %7, %9 : vector<16x128xf32>
    %c0_8 = arith.constant 0 : index
    %c0_9 = arith.constant 0 : index
    %11 = vector.load %arg6[%c0_8, %c0_9] : memref<16x128xf32, #tpu.memory_space<vmem>>, vector<16x128xf32>
    tpu.vector_store %arg6[%c0_8, %c0_9], %10 {strides = array<i32>} : memref<16x128xf32, #tpu.memory_space<vmem>>, vector<16x128xf32>,
    return
  }
  func.func @transform_0(%arg0: i32, %arg1: i32) -> (i32, i32) {
    %c0_i32 = arith.constant 0 : i32
    %c0_i32_0 = arith.constant 0 : i32
    return %arg0, %c0_i32 : i32, i32
  }
  func.func @transform_1(%arg0: i32, %arg1: i32) -> (i32, i32) {
    %c0_i32 = arith.constant 0 : i32
    %c0_i32_0 = arith.constant 0 : i32
    return %arg1, %c0_i32 : i32, i32
  }
  func.func @transform_2(%arg0: i32, %arg1: i32) -> (i32, i32) {
    %c0_i32 = arith.constant 0 : i32
    %c0_i32_0 = arith.constant 0 : i32
    return %arg0, %c0_i32 : i32, i32
  }
  func.func @transform_3(%arg0: i32, %arg1: i32) -> (i32, i32) {
    %c0_i32 = arith.constant 0 : i32
    %c0_i32_0 = arith.constant 0 : i32
    return %c0_i32, %arg1 : i32, i32
  }
  func.func @transform_4(%arg0: i32, %arg1: i32) -> (i32, i32) {
    %c0_i32 = arith.constant 0 : i32
    return %arg0, %arg1 : i32, i32
  }
}

</mosaic_0001>

<llo_original>
// kernel: tpu_custom_call.1
$region0: #{tpu_custom_call.1}
  #allocation0 [shape = 'u32[]', space=smem, size = 0x4, offset = 0x4, fixed_abs, tag = 'smem constant byte address 0x4 - core index']
  #allocation1 [shape = 'u32[144,128]{1,0:T(1,128)}', space=vmem, size = 0x12000, scoped, tag = 'internal scratch']
  %s0 = inlined_call_operand.vmem [shape: f32[16,32], index: 0, kind: input, shape index: {}]
  %s1 = inlined_call_operand.hbm [shape: f32[8,32], index: 1, kind: input, shape index: {}]
  %s2 = inlined_call_operand.vmem [shape: f32[16,1], index: 2, kind: input, shape index: {}]
  %s3 = inlined_call_operand.vmem [shape: f32[1,8], index: 3, kind: input, shape index: {}]
  %s4 = inlined_call_operand.vmem [shape: f32[16,8], index: 4, kind: output, shape index: {}]
  %s5 = sld [smem:[#allocation0]]
  $region30: #{tpu_custom_call.1} parent=0
    _
  %s7 = ssub.s32 1, %s5
  %s8 = scalar_select 0, %s7, %s5
  $region1: #{tpu_custom_call.1} parent=0
    #allocation2 [shape = 'u8[65536]{0}', space=vmem, size = 0x10000, scoped, tag = 'input window, operand 1, single buffered']
    #allocation3 [shape = 's32[1]{0}', space=sflag, size = 0x4, scoped, tag = 'scoped memory for tpu_custom_call.1']
    %9 = vsyncpa [#allocation3], 0
    // Predicated region
    $region2: #{tpu_custom_call.1} parent=1 // pred_check
      _
    $region3: #{tpu_custom_call.1} parent=1 // pred_check_branch
      %11 = sbr.rel (0) target = $region5
    $region4: #{tpu_custom_call.1} parent=1 // pred_region
      _
    $region5: #{tpu_custom_call.1} parent=1 // pred_fallthru
      _
    // Predicated region
    $region6: #{tpu_custom_call.1} parent=1 // pred_check
      _
    $region7: #{tpu_custom_call.1} parent=1 // pred_check_branch
      %13 = sbr.rel (0) target = $region9
    $region8: #{tpu_custom_call.1} parent=1 // pred_region
      %s15 = ssub.s32 2048, 128
      %16 = vsyncadd [#allocation3], %s15
      %s17 = sshll.u32 [#allocation2], 4
      %s18 = int_to_ptr.vmem [resolvable:$true] %s17
      %23 = dma.hbm_to_vmem [thread:$0]  %s1, 128, %s18, [#allocation3], 128, 128, 8
    $region9: #{tpu_custom_call.1} parent=1 // pred_fallthru
      _
    // Predicated region
    $region10: #{tpu_custom_call.1} parent=1 // pred_check
      _
    $region11: #{tpu_custom_call.1} parent=1 // pred_check_branch
      %25 = sbr.rel (0) target = $region13
    $region12: #{tpu_custom_call.1} parent=1 // pred_region
      _
    $region13: #{tpu_custom_call.1} parent=1 // pred_fallthru
      _
    // Predicated region
    $region14: #{tpu_custom_call.1} parent=1 // pred_check
      _
    $region15: #{tpu_custom_call.1} parent=1 // pred_check_branch
      %27 = sbr.rel (0) target = $region17
    $region16: #{tpu_custom_call.1} parent=1 // pred_region
      _
    $region17: #{tpu_custom_call.1} parent=1 // pred_fallthru
      _
    // Predicated region
    $region18: #{tpu_custom_call.1} parent=1 // pred_check
      _
    $region19: #{tpu_custom_call.1} parent=1 // pred_check_branch
      %29 = sbr.rel (0) target = $region21
    $region20: #{tpu_custom_call.1} parent=1 // pred_region
      %30 = dma.done [#allocation3], 2048
    $region21: #{tpu_custom_call.1} parent=1 // pred_fallthru
      _
    %v31 = vld [vmem:[%s0] sm:$0xff]
    %v32 = vld [vmem:[%s0 + $0x8] sm:$0xff]
    %v33 = vld [vmem:[#allocation2] sm:$0xff]
    %v34 = vld [vmem:[#allocation2 + $0x8] sm:$0xff]
    %v35 = vld [vmem:[#allocation2 + $0x10] sm:$0xff]
    %v36 = vld [vmem:[#allocation2 + $0x18] sm:$0xff]
    %v37 = vld [vmem:[#allocation2 + $0x20] sm:$0xff]
    %v38 = vld [vmem:[#allocation2 + $0x28] sm:$0xff]
    %v39 = vld [vmem:[#allocation2 + $0x30] sm:$0xff]
    %v40 = vld [vmem:[#allocation2 + $0x38] sm:$0xff]
    %v41 = vld [vmem:[#allocation2 + $0x40] sm:$0xff]
    %v42 = vld [vmem:[#allocation2 + $0x48] sm:$0xff]
    %v43 = vld [vmem:[#allocation2 + $0x50] sm:$0xff]
    %v44 = vld [vmem:[#allocation2 + $0x58] sm:$0xff]
    %v45 = vld [vmem:[#allocation2 + $0x60] sm:$0xff]
    %v46 = vld [vmem:[#allocation2 + $0x68] sm:$0xff]
    %v47 = vld [vmem:[#allocation2 + $0x70] sm:$0xff]
    %v48 = vld [vmem:[#allocation2 + $0x78] sm:$0xff]
    %vm49 = vcmask 261120
    %v51 = vsel %vm49, %v31, 0
    %v54 = vsel %vm49, %v32, 0
    %v57 = vsel %vm49, %v33, 0
    %v60 = vsel %vm49, %v34, 0
    %v63 = vsel %vm49, %v35, 0
    %v66 = vsel %vm49, %v36, 0
    %v69 = vsel %vm49, %v37, 0
    %v72 = vsel %vm49, %v38, 0
    %v75 = vsel %vm49, %v39, 0
    %v78 = vsel %vm49, %v40, 0
    %v81 = vsel %vm49, %v41, 0
    %v84 = vsel %vm49, %v42, 0
    %v87 = vsel %vm49, %v43, 0
    %v90 = vsel %vm49, %v44, 0
    %v93 = vsel %vm49, %v45, 0
    %v96 = vsel %vm49, %v46, 0
    %v99 = vsel %vm49, %v47, 0
    %v102 = vsel %vm49, %v48, 0
    %104 = vmatprep.subr.mxu0 0.0
    %105 = vmatpush1.xpose.msra.mxu0 %v102
    %106 = vmatprep.subr.mxu0 0.0
    %107 = vmatpush1.xpose.msra.mxu0 %v99
    %108 = vmatprep.subr.mxu0 0.0
    %109 = vmatpush1.xpose.msra.mxu0 %v96
    %110 = vmatprep.subr.mxu0 0.0
    %111 = vmatpush1.xpose.msra.mxu0 %v93
    %112 = vmatprep.subr.mxu0 0.0
    %113 = vmatpush1.xpose.msra.mxu0 %v90
    %114 = vmatprep.subr.mxu0 0.0
    %115 = vmatpush1.xpose.msra.mxu0 %v87
    %116 = vmatprep.subr.mxu0 0.0
    %117 = vmatpush1.xpose.msra.mxu0 %v84
    %118 = vmatprep.subr.mxu0 0.0
    %119 = vmatpush1.xpose.msra.mxu0 %v81
    %120 = vmatprep.subr.mxu0 0.0
    %121 = vmatpush1.xpose.msra.mxu0 %v78
    %122 = vmatprep.subr.mxu0 0.0
    %123 = vmatpush1.xpose.msra.mxu0 %v75
    %124 = vmatprep.subr.mxu0 0.0
    %125 = vmatpush1.xpose.msra.mxu0 %v72
    %126 = vmatprep.subr.mxu0 0.0
    %127 = vmatpush1.xpose.msra.mxu0 %v69
    %128 = vmatprep.subr.mxu0 0.0
    %129 = vmatpush1.xpose.msra.mxu0 %v66
    %130 = vmatprep.subr.mxu0 0.0
    %131 = vmatpush1.xpose.msra.mxu0 %v63
    %132 = vmatprep.subr.mxu0 0.0
    %133 = vmatpush1.xpose.msra.mxu0 %v60
    %134 = vmatprep.subr.mxu0 0.0
    %135 = vmatpush1.xpose.msra.mxu0 %v57
    %136 = vmatprep.subr.mxu0 0.0
    %137 = vmatpush2.xpose.msra.mxu0 0.0
    %138 = vmatprep.subr.mxu0 0.0
    %139 = vmatpush2.xpose.msra.mxu0 0.0
    %140 = vmatprep.subr.mxu0 0.0
    %141 = vmatpush2.xpose.msra.mxu0 0.0
    %142 = vmatprep.subr.mxu0 0.0
    %143 = vmatpush2.xpose.msra.mxu0 0.0
    %144 = vmatprep.subr.mxu0 0.0
    %145 = vmatpush2.xpose.msra.mxu0 0.0
    %146 = vmatprep.subr.mxu0 0.0
    %147 = vmatpush2.xpose.msra.mxu0 0.0
    %148 = vmatprep.subr.mxu0 0.0
    %149 = vmatpush2.xpose.msra.mxu0 0.0
    %150 = vmatprep.subr.mxu0 0.0
    %151 = vmatpush2.xpose.msra.mxu0 0.0
    %152 = vmatprep.subr.mxu0 0.0
    %153 = vmatpush2.xpose.msra.mxu0 0.0
    %154 = vmatprep.subr.mxu0 0.0
    %155 = vmatpush2.xpose.msra.mxu0 0.0
    %156 = vmatprep.subr.mxu0 0.0
    %157 = vmatpush2.xpose.msra.mxu0 0.0
    %158 = vmatprep.subr.mxu0 0.0
    %159 = vmatpush2.xpose.msra.mxu0 0.0
    %160 = vmatprep.subr.mxu0 0.0
    %161 = vmatpush2.xpose.msra.mxu0 0.0
    %162 = vmatprep.subr.mxu0 0.0
    %163 = vmatpush2.xpose.msra.mxu0 0.0
    %164 = vmatprep.subr.mxu0 0.0
    %165 = vmatpush2.xpose.msra.mxu0 0.0
    %166 = vmatprep.subr.mxu0 0.0
    %167 = vmatpush2.xpose.msra.mxu0 0.0
    %168 = vmatprep.mubr.f32.mxu0 0.0
    %169 = vmatmul.mubr.f32.gmra.mxu0 %v51
    %v170 = vpop.f32.mrf.mxu0
    %v171 = vadd.f32 0.0, %v170
    %v172 = vpop.f32.mrf.mxu0
    %173 = vmatprep.mubr.f32.mxu0 0.0
    %174 = vmatmul.mubr.f32.gmra.mxu0 %v54
    %v175 = vpop.f32.mrf.mxu0
    %v176 = vadd.f32 0.0, %v175
    %v177 = vpop.f32.mrf.mxu0
    %178 = vdwg.mxu0
    %v179 = vld [vmem:[%s2] sm:$0xff]
    %v180 = vld [vmem:[%s2 + $0x8] sm:$0xff]
    %v181 = vld [vmem:[%s3] sm:$0x1]
    %183 = vset.pattern.permute.xlu0 0
    %184 = vperm.xlu0 %183, %v179
    %v185 = vpop.permute.xlu0 %184
    %188 = vset.pattern.permute.xlu0 0
    %189 = vperm.xlu0 %188, %v180
    %v190 = vpop.permute.xlu0 %189
    %v193 = vlaneseq
    %v194 = vshrl.u32 %v193, 7
    %v195 = vsub.s32 0, %v194
    %v196 = vrot.slane %v181, %v195
    %v198 = vadd.f32 %v185, %v196
    %v199 = vadd.f32 %v190, %v196
    %v200 = vmul.f32 %v171, 2.0
    %v201 = vmul.f32 %v176, 2.0
    %v202 = vsub.f32 %v198, %v200
    %v203 = vsub.f32 %v199, %v201
    %204 = vst [vmem:[%s4] sm:$0xff] %v202
    %205 = vst [vmem:[%s4 + $0x8] sm:$0xff] %v203
    // Predicated region
    $region22: #{tpu_custom_call.1} parent=1 // pred_check
      _
    $region23: #{tpu_custom_call.1} parent=1 // pred_check_branch
      %207 = sbr.rel (0) target = $region25
    $region24: #{tpu_custom_call.1} parent=1 // pred_region
      _
    $region25: #{tpu_custom_call.1} parent=1 // pred_fallthru
      _
    // Predicated region
    $region26: #{tpu_custom_call.1} parent=1 // pred_check
      _
    $region27: #{tpu_custom_call.1} parent=1 // pred_check_branch
      %209 = sbr.rel (0) target = $region29
    $region28: #{tpu_custom_call.1} parent=1 // pred_region
      _
    $region29: #{tpu_custom_call.1} parent=1 // pred_fallthru
      _
    %210 = vsyncpa [#allocation3], 1

</llo_original>
